<compile_context>
chip_gen: v5e
topology: v5e:2x2
jax: 0.10.0
libtpu: 0.0.40
codegen_flags: <defaults>
</compile_context>

<pallas_src>
import functools
import math

import jax
import jax.numpy as jnp
from jax import lax
from jax.experimental import pallas as pl
from jax.experimental.pallas import tpu as pltpu

INF = 100000000.0


def _round_up(x, m):
    return ((x + m - 1) // m) * m


def _vmem_limit(bytes_needed):
    # footprint-derived scoped-VMEM budget with 2x headroom, clamped to a safe range
    return int(min(max(2 * bytes_needed, 8 << 20), 32 << 20))


def _auto_tile_n(G):
    # keep ~8 live (G, tile_n) f32 temporaries comfortably inside the 64 x 4 KiB vreg
    # file: tile_n ~ 8192 / G, clamped to [128, 2048] and a multiple of 128.
    per_lane = max(128, (8192 // max(int(G), 1)) // 128 * 128)
    return min(2048, per_lane)


# ----------------------------------------------------------------------------
# Kernel 1: FCOS target assignment
#   grid = (image, N-tile), both "parallel"; N rides on the 128-lane axis.
#   Output is one merged (B, 8, N) slab -> single 8-sublane writeback DMA per tile.
# ----------------------------------------------------------------------------
def _assign_kernel(loc_ref, soi_ref, tgt_ref, out_ref):
    # loc_ref: (2, TN)  rows = [x, y]      soi_ref: (2, TN)  rows = [lo, hi]
    # tgt_ref: (1, G, 5) cols = [x0, y0, w, h, label]
    # out_ref: (1, 8, TN) rows = [l, t, r, b, label, 0, 0, 0]
    G = tgt_ref.shape[1]
    TN = loc_ref.shape[1]

    xs = loc_ref[0:1, :]                      # (1, TN)
    ys = loc_ref[1:2, :]
    lo = soi_ref[0:1, :]
    hi = soi_ref[1:2, :]
    is_pad = lo > hi                          # padded location columns (soi = [INF,-INF])

    bx = tgt_ref[0, :, 0:1]                   # (G, 1)
    by = tgt_ref[0, :, 1:2]
    bw = tgt_ref[0, :, 2:3]
    bh = tgt_ref[0, :, 3:4]
    lab = tgt_ref[0, :, 4:5]

    # NOTE: matches the reference torch code verbatim (right/bottom use w/2, h/2).
    left = xs - bx                            # (G, TN)
    top = ys - by
    right = xs + bw * 0.5
    bottom = ys + bh * 0.5

    min_b = jnp.minimum(jnp.minimum(left, top), jnp.minimum(right, bottom))
    max_b = jnp.maximum(jnp.maximum(left, top), jnp.maximum(right, bottom))

    # TODO(synk): center_sampling=True path (get_sample_region) not implemented;
    # this kernel implements the center_sampling=False branch of the module.
    is_in = min_b > 0.0
    cared = (max_b >= lo) & (max_b <= hi)
    valid_gt = lab > 0.0                      # (G, 1): rows with label <= 0 are padding

    area = bw * bh                                               # (G, 1), broadcasts
    loc2gt = jnp.where(is_in & cared & valid_gt, area, INF)      # (G, TN)

    min_area = jnp.min(loc2gt, axis=0, keepdims=True)            # (1, TN)
    ids = lax.broadcasted_iota(jnp.int32, (G, TN), 0)
    # first index attaining the minimum (matches torch .min(dim)[1])
    gt_id = jnp.min(jnp.where(loc2gt == min_area, ids, G), axis=0, keepdims=True)
    onehot = (ids == gt_id).astype(jnp.float32)                  # (G, TN)

    def sel(v):                                                  # (G,TN) -> (1,TN)
        return jnp.sum(v * onehot, axis=0, keepdims=True)

    lab_sel = sel(jnp.broadcast_to(lab, (G, TN)))
    label_out = jnp.where(is_pad, -1.0,
                          jnp.where(min_area == INF, 0.0, lab_sel))

    # one unmasked 8-sublane store (rows 5-7 stay zero)
    rows = lax.broadcasted_iota(jnp.int32, (8, TN), 0)
    slab = (jnp.where(rows == 0, sel(left), 0.0)
            + jnp.where(rows == 1, sel(top), 0.0)
            + jnp.where(rows == 2, sel(right), 0.0)
            + jnp.where(rows == 3, sel(bottom), 0.0)
            + jnp.where(rows == 4, label_out, 0.0))
    out_ref[0] = slab


def assign_targets(loc_t, soi_t, targets, *, tile_n):
    # loc_t, soi_t: (2, N_pad); targets: (B, G, 5) -> (B, 8, N_pad)
    B, G, _ = targets.shape
    n_pad = loc_t.shape[1]
    n_tiles = n_pad // tile_n
    bytes_needed = (2 * ((2 + 2 + 8) * tile_n * 4 + G * 5 * 4)
                    + 8 * G * tile_n * 4)     # pipeline bufs + (G,TN) temporaries
    return pl.pallas_call(
        _assign_kernel,
        grid=(B, n_tiles),
        in_specs=[
            pl.BlockSpec((2, tile_n), lambda b, t: (0, t)),
            pl.BlockSpec((2, tile_n), lambda b, t: (0, t)),
            pl.BlockSpec((1, G, 5), lambda b, t: (b, 0, 0)),
        ],
        out_specs=pl.BlockSpec((1, 8, tile_n), lambda b, t: (b, 0, t)),
        out_shape=jax.ShapeDtypeStruct((B, 8, n_pad), jnp.float32),
        compiler_params=pltpu.CompilerParams(
            dimension_semantics=("parallel", "parallel"),
            vmem_limit_bytes=_vmem_limit(bytes_needed)),
    )(loc_t, soi_t, targets)


# ----------------------------------------------------------------------------
# Kernel 2: losses
#   grid = (image, M-tile): image axis "parallel" (megacore), M axis "arbitrary"
#   with per-lane VMEM accumulators. Each image emits its own (8, 128) partial-sum
#   slab (no shared scalar output block across cores).
# ----------------------------------------------------------------------------
def _loss_kernel(cls_ref, tgt_ref, boxp_ref, ctr_ref, out_ref,
                 facc, pacc, iwacc, cwacc, iacc, bacc,
                 *, gamma, alpha):
    t_idx = pl.program_id(1)

    @pl.when(t_idx == 0)
    def _init():
        for acc in (facc, pacc, iwacc, cwacc, iacc, bacc):
            acc[...] = jnp.zeros_like(acc)

    cls = cls_ref[0]               # (C, TM)
    tgt = tgt_ref[0]               # (8, TM)  rows: l,t,r,b,label,0,0,0
    bp = boxp_ref[0]               # (4, TM)
    x = ctr_ref[0]                 # (1, TM)
    C, TM = cls.shape

    tl = tgt[0:1, :]
    tt = tgt[1:2, :]
    tr = tgt[2:3, :]
    tb = tgt[3:4, :]
    labels = tgt[4:5, :]           # (1, TM); -1 marks padded columns

    # ---- SigmoidFocalLoss (stable; one exp + one log + approx recip per elem) ----
    class_ids = lax.broadcasted_iota(jnp.float32, (C, TM), 0) + 1.0
    match = labels == class_ids                          # (C, TM)
    valid = labels >= 0.0                                # (1, TM) -> broadcast
    z = jnp.where(match, cls, -cls)
    e = jnp.exp(-jnp.abs(z))
    neg_log_pt = jnp.log(1.0 + e) - jnp.minimum(z, 0.0)          # = -log(sigmoid(z))
    one_minus_pt = jnp.where(z >= 0.0, e, 1.0) * pl.reciprocal(1.0 + e, approx=True)
    if float(gamma) == 2.0:
        mod = one_minus_pt * one_minus_pt
    else:
        mod = jnp.power(one_minus_pt, gamma)
    alpha_t = jnp.where(match, alpha, 1.0 - alpha)
    focal = jnp.where(valid, alpha_t * mod * neg_log_pt, 0.0)
    facc[...] += jnp.sum(focal, axis=0, keepdims=True)           # (1, TM)

    pos = labels > 0.0                                           # (1, TM)
    pacc[...] += pos.astype(jnp.float32)

    # ---- centerness targets (only meaningful at positives) ----
    lr_min = jnp.minimum(tl, tr)
    lr_max = jnp.maximum(tl, tr)
    tb_min = jnp.minimum(tt, tb)
    tb_max = jnp.maximum(tt, tb)
    # sqrt((lr_min/lr_max)*(tb_min/tb_max)) with one sqrt + one rsqrt
    ctr_tgt = jnp.sqrt(lr_min * tb_min) * lax.rsqrt(lr_max * tb_max)
    ctr_tgt = jnp.where(pos, ctr_tgt, 0.0)

    # ---- IOULoss('iou') restricted to positives ----
    pl_, pt_, pr_, pb_ = bp[0:1, :], bp[1:2, :], bp[2:3, :], bp[3:4, :]
    target_area = (tl + tr) * (tt + tb)
    pred_area = (pl_ + pr_) * (pt_ + pb_)
    w_int = jnp.minimum(pl_, tl) + jnp.minimum(pr_, tr)
    h_int = jnp.minimum(pb_, tb) + jnp.minimum(pt_, tt)
    area_int = w_int * h_int
    area_union = target_area + pred_area - area_int
    # -log((ai+1)/(au+1)) == log(au+1) - log(ai+1)
    iou_loss = jnp.log(area_union + 1.0) - jnp.log(area_int + 1.0)
    iou_loss = jnp.where(pos, iou_loss, 0.0)

    iwacc[...] += iou_loss * ctr_tgt
    cwacc[...] += ctr_tgt
    iacc[...] += iou_loss

    # ---- BCEWithLogitsLoss over positives ----
    bce = jnp.maximum(x, 0.0) - x * ctr_tgt + jnp.log(1.0 + jnp.exp(-jnp.abs(x)))
    bacc[...] += jnp.where(pos, bce, 0.0)

    @pl.when(t_idx == pl.num_programs(1) - 1)
    def _finalize():
        rows = lax.broadcasted_iota(jnp.int32, (8, 128), 0)
        slab = (jnp.where(rows == 0, jnp.sum(facc[...]), 0.0)
                + jnp.where(rows == 1, jnp.sum(pacc[...]), 0.0)
                + jnp.where(rows == 2, jnp.sum(iwacc[...]), 0.0)
                + jnp.where(rows == 3, jnp.sum(cwacc[...]), 0.0)
                + jnp.where(rows == 4, jnp.sum(iacc[...]), 0.0)
                + jnp.where(rows == 5, jnp.sum(bacc[...]), 0.0))
        out_ref[0] = slab


def fcos_losses(cls_t, tgt_t, boxp_t, ctr_t, *, gamma, alpha, tile_m):
    # cls_t: (B, C, N_pad), tgt_t: (B, 8, N_pad), boxp_t: (B, 4, N_pad), ctr_t: (B, 1, N_pad)
    B, C, n_pad = cls_t.shape
    n_tiles = n_pad // tile_m
    kernel = functools.partial(_loss_kernel, gamma=float(gamma), alpha=float(alpha))
    bytes_needed = (2 * (C + 8 + 4 + 1) * tile_m * 4      # double-buffered inputs
                    + 6 * tile_m * 4                       # accumulators
                    + 2 * 8 * 128 * 4                      # output block
                    + 4 * C * tile_m * 4)                  # headroom for (C,TM) temps
    return pl.pallas_call(
        kernel,
        grid=(B, n_tiles),
        in_specs=[
            pl.BlockSpec((1, C, tile_m), lambda b, t: (b, 0, t)),
            pl.BlockSpec((1, 8, tile_m), lambda b, t: (b, 0, t)),
            pl.BlockSpec((1, 4, tile_m), lambda b, t: (b, 0, t)),
            pl.BlockSpec((1, 1, tile_m), lambda b, t: (b, 0, t)),
        ],
        out_specs=pl.BlockSpec((1, 8, 128), lambda b, t: (b, 0, 0)),
        out_shape=jax.ShapeDtypeStruct((B, 8, 128), jnp.float32),
        scratch_shapes=[pltpu.VMEM((1, tile_m), jnp.float32)] * 6,
        compiler_params=pltpu.CompilerParams(
            dimension_semantics=("parallel", "arbitrary"),
            vmem_limit_bytes=_vmem_limit(bytes_needed)),
    )(cls_t, tgt_t, boxp_t, ctr_t)


# ----------------------------------------------------------------------------
# FCOSLoss wrapper (plain-JAX plumbing; no transposes / relayouts of large tensors)
# ----------------------------------------------------------------------------
class FCOSLossPallas:
    def __init__(self, sizes, gamma, alpha, center_sampling, fpn_strides, pos_radius,
                 tile_m=8192, tile_n=None):
        self.sizes = sizes
        self.gamma = gamma
        self.alpha = alpha
        self.center_sampling = center_sampling  # TODO(synk): True branch (get_sample_region) not implemented
        self.fpn_strides = fpn_strides
        self.radius = pos_radius
        assert tile_m % 128 == 0
        if tile_n is not None:
            assert tile_n % 128 == 0
        self.tile_m = tile_m
        self.tile_n = tile_n

    def __call__(self, locations, preds, targets):
        pred_logits, pred_bboxes, pred_centers = preds
        n_levels = len(pred_logits)
        B = pred_logits[0].shape[0]
        C = pred_logits[0].shape[1]
        n_per_level = [int(loc.shape[0]) for loc in locations]
        n_total = sum(n_per_level)

        targets = targets.astype(jnp.float32)         # (B, G, 5) = [x0, y0, w, h, label]
        G = int(targets.shape[1])

        tile_n = self.tile_n if self.tile_n is not None else _auto_tile_n(G)
        tile_n = min(tile_n, _round_up(n_total, 128))
        tile_m = min(self.tile_m, _round_up(n_total, 128))
        pad_mult = tile_n * tile_m // math.gcd(tile_n, tile_m)
        n_pad = _round_up(n_total, pad_mult)
        tail = n_pad - n_total

        # lane-dense (2, N_pad) locations / sizes-of-interest; tail columns get the
        # never-assigned window [INF, -INF] so kernel 1 emits label = -1 for them.
        loc_cols = [loc.astype(jnp.float32).T for loc in locations]
        soi_cols = [jnp.broadcast_to(jnp.asarray(self.sizes[i], jnp.float32)[:, None], (2, n))
                    for i, n in enumerate(n_per_level)]
        if tail:
            loc_cols.append(jnp.zeros((2, tail), jnp.float32))
            soi_cols.append(jnp.broadcast_to(
                jnp.asarray([[INF], [-INF]], jnp.float32), (2, tail)))
        loc_t = jnp.concatenate(loc_cols, axis=1)
        soi_t = jnp.concatenate(soi_cols, axis=1)

        # predictions stay in native (B, rows, N) layout: reshape (free) + concat along
        # the lane axis only -> no HBM transpose/relayout of the large tensors.
        def cat_last(xs, rows):
            cols = [x.astype(jnp.float32).reshape(B, rows, -1) for x in xs]
            if tail:
                cols.append(jnp.zeros((B, rows, tail), jnp.float32))
            return jnp.concatenate(cols, axis=2)

        cls_t = cat_last(pred_logits, C)       # (B, C, N_pad)
        box_t = cat_last(pred_bboxes, 4)       # (B, 4, N_pad)
        ctr_t = cat_last(pred_centers, 1)      # (B, 1, N_pad)

        # kernel 1: per-image target assignment -> merged (B, 8, N_pad) slab
        tgt_slab = assign_targets(loc_t, soi_t, targets, tile_n=tile_n)

        # kernel 2: per-image partial sums -> (B, 8, 128)
        partials = fcos_losses(cls_t, tgt_slab, box_t, ctr_t,
                               gamma=self.gamma, alpha=self.alpha, tile_m=tile_m)

        p = jnp.sum(partials[:, :, 0], axis=0)         # (8,)
        focal_sum, n_pos = p[0], p[1]
        iouw_sum, w_sum, iou_sum, bce_sum = p[2], p[3], p[4], p[5]

        # NOTE: the torch module divides by (n_pos + len(pred_logits)); it names
        # len(pred_logits) "batch_size" but it is the number of FPN levels.
        cls_loss = focal_sum / (n_pos + float(n_levels))
        box_loss = jnp.where(w_sum > 0.0, iouw_sum / w_sum, iou_sum / n_pos)
        box_loss = jnp.where(n_pos > 0.0, box_loss, 0.0)
        ctr_loss = jnp.where(n_pos > 0.0, bce_sum / n_pos, 0.0)

        # nan_to_num only when NaN, matching the torch.isnan guards
        cls_loss = jnp.where(jnp.isnan(cls_loss), 0.0, cls_loss)
        box_loss = jnp.where(jnp.isnan(box_loss), 0.0, box_loss)
        ctr_loss = jnp.where(jnp.isnan(ctr_loss), 0.0, ctr_loss)
        return cls_loss, box_loss, ctr_loss


def make_locations(h, w, stride):
    shift_x = jnp.arange(w, dtype=jnp.float32) * stride + stride // 2
    shift_y = jnp.arange(h, dtype=jnp.float32) * stride + stride // 2
    ys, xs = jnp.meshgrid(shift_y, shift_x, indexing="ij")
    return jnp.stack([xs.reshape(-1), ys.reshape(-1)], axis=1)  # (H*W, 2)


if __name__ == "__main__":
    B, C, G = 2, 4, 3
    level_cfg = [(8, 16, 16), (16, 8, 8)]          # (stride, H, W) -> N = 256 + 64 = 320
    sizes = [[-1.0, 64.0], [64.0, INF]]

    key = jax.random.PRNGKey(0)
    keys = jax.random.split(key, 3 * len(level_cfg) + 3)

    locations = [make_locations(h, w, s) for (s, h, w) in level_cfg]

    pred_logits, pred_bboxes, pred_centers = [], [], []
    for li, (s, h, w) in enumerate(level_cfg):
        pred_logits.append(jax.random.normal(keys[3 * li + 0], (B, C, h, w), jnp.float32))
        pred_bboxes.append(jnp.abs(jax.random.normal(keys[3 * li + 1], (B, 4, h, w),
                                                     jnp.float32)) * 20.0 + 1.0)
        pred_centers.append(jax.random.normal(keys[3 * li + 2], (B, 1, h, w), jnp.float32))

    kxy, kwh, klab = keys[-3], keys[-2], keys[-1]
    xy = jax.random.uniform(kxy, (B, G, 2), minval=0.0, maxval=30.0)
    wh = jax.random.uniform(kwh, (B, G, 2), minval=40.0, maxval=100.0)
    lab = jax.random.randint(klab, (B, G, 1), 1, C + 1).astype(jnp.float32)
    targets = jnp.concatenate([xy, wh, lab], axis=2)  # (B, G, 5) = [x, y, w, h, label]

    # small tiles so the demo exercises the multi-tile accumulate path (grid (2, 3))
    loss_fn = FCOSLossPallas(sizes=sizes, gamma=2.0, alpha=0.25,
                             center_sampling=False,
                             fpn_strides=[s for (s, _, _) in level_cfg],
                             pos_radius=1, tile_m=128, tile_n=128)

    cls_loss, box_loss, center_loss = loss_fn(
        locations, (pred_logits, pred_bboxes, pred_centers), targets)
    jax.block_until_ready((cls_loss, box_loss, center_loss))
    print("KERNEL_OK")
</pallas_src>

<mosaic_0001>
module attributes {stable_mosaic.version = 11 : i64} {
  func.func @_assign_kernel(%arg0: i32, %arg1: i32, %arg2: memref<2x128xf32, #tpu.memory_space<vmem>>, %arg3: memref<2x128xf32, #tpu.memory_space<vmem>>, %arg4: memref<1x3x5xf32, #tpu.memory_space<vmem>>, %arg5: memref<1x8x128xf32, #tpu.memory_space<vmem>>) attributes {dimension_semantics = [#tpu.dimension_semantics<parallel>, #tpu.dimension_semantics<parallel>], iteration_bounds = array<i64: 2, 3>, scalar_prefetch = 0 : i64, scratch_operands = 0 : i64, tpu.core_type = #tpu.core_type<tc>, window_params = [{transform_indices = @transform_0, window_bounds = array<i64: 2, 128>}, {transform_indices = @transform_1, window_bounds = array<i64: 2, 128>}, {transform_indices = @transform_2, window_bounds = array<i64: 1, 3, 5>}, {transform_indices = @transform_3, window_bounds = array<i64: 1, 8, 128>}]} {
    %c0 = arith.constant 0 : index
    %c0_0 = arith.constant 0 : index
    %0 = vector.load %arg2[%c0, %c0_0] : memref<2x128xf32, #tpu.memory_space<vmem>>, vector<1x128xf32>
    %c1 = arith.constant 1 : index
    %c0_1 = arith.constant 0 : index
    %1 = vector.load %arg2[%c1, %c0_1] : memref<2x128xf32, #tpu.memory_space<vmem>>, vector<1x128xf32>
    %c0_2 = arith.constant 0 : index
    %c0_3 = arith.constant 0 : index
    %2 = vector.load %arg3[%c0_2, %c0_3] : memref<2x128xf32, #tpu.memory_space<vmem>>, vector<1x128xf32>
    %c1_4 = arith.constant 1 : index
    %c0_5 = arith.constant 0 : index
    %3 = vector.load %arg3[%c1_4, %c0_5] : memref<2x128xf32, #tpu.memory_space<vmem>>, vector<1x128xf32>
    %4 = arith.cmpf ogt, %2, %3 : vector<1x128xf32>
    %c0_6 = arith.constant 0 : index
    %c0_7 = arith.constant 0 : index
    %c0_8 = arith.constant 0 : index
    %5 = vector.load %arg4[%c0_6, %c0_7, %c0_8] : memref<1x3x5xf32, #tpu.memory_space<vmem>>, vector<1x3x1xf32>
    %6 = vector.shape_cast %5 : vector<1x3x1xf32> to vector<3x1xf32>
    %c0_9 = arith.constant 0 : index
    %c0_10 = arith.constant 0 : index
    %c1_11 = arith.constant 1 : index
    %7 = vector.load %arg4[%c0_9, %c0_10, %c1_11] : memref<1x3x5xf32, #tpu.memory_space<vmem>>, vector<1x3x1xf32>
    %8 = vector.shape_cast %7 : vector<1x3x1xf32> to vector<3x1xf32>
    %c0_12 = arith.constant 0 : index
    %c0_13 = arith.constant 0 : index
    %c2 = arith.constant 2 : index
    %9 = vector.load %arg4[%c0_12, %c0_13, %c2] : memref<1x3x5xf32, #tpu.memory_space<vmem>>, vector<1x3x1xf32>
    %10 = vector.shape_cast %9 : vector<1x3x1xf32> to vector<3x1xf32>
    %c0_14 = arith.constant 0 : index
    %c0_15 = arith.constant 0 : index
    %c3 = arith.constant 3 : index
    %11 = vector.load %arg4[%c0_14, %c0_15, %c3] : memref<1x3x5xf32, #tpu.memory_space<vmem>>, vector<1x3x1xf32>
    %12 = vector.shape_cast %11 : vector<1x3x1xf32> to vector<3x1xf32>
    %c0_16 = arith.constant 0 : index
    %c0_17 = arith.constant 0 : index
    %c4 = arith.constant 4 : index
    %13 = vector.load %arg4[%c0_16, %c0_17, %c4] : memref<1x3x5xf32, #tpu.memory_space<vmem>>, vector<1x3x1xf32>
    %14 = vector.shape_cast %13 : vector<1x3x1xf32> to vector<3x1xf32>
    %15 = vector.broadcast %0 : vector<1x128xf32> to vector<3x128xf32>
    %16 = vector.broadcast %6 : vector<3x1xf32> to vector<3x128xf32>
    %17 = arith.subf %15, %16 : vector<3x128xf32>
    %18 = vector.broadcast %1 : vector<1x128xf32> to vector<3x128xf32>
    %19 = vector.broadcast %8 : vector<3x1xf32> to vector<3x128xf32>
    %20 = arith.subf %18, %19 : vector<3x128xf32>
    %cst = arith.constant 5.000000e-01 : f32
    %21 = vector.broadcast %cst : f32 to vector<3x1xf32>
    %22 = arith.mulf %10, %21 : vector<3x1xf32>
    %23 = vector.broadcast %0 : vector<1x128xf32> to vector<3x128xf32>
    %24 = vector.broadcast %22 : vector<3x1xf32> to vector<3x128xf32>
    %25 = arith.addf %23, %24 : vector<3x128xf32>
    %cst_18 = arith.constant 5.000000e-01 : f32
    %26 = vector.broadcast %cst_18 : f32 to vector<3x1xf32>
    %27 = arith.mulf %12, %26 : vector<3x1xf32>
    %28 = vector.broadcast %1 : vector<1x128xf32> to vector<3x128xf32>
    %29 = vector.broadcast %27 : vector<3x1xf32> to vector<3x128xf32>
    %30 = arith.addf %28, %29 : vector<3x128xf32>
    %31 = arith.minimumf %17, %20 : vector<3x128xf32>
    %32 = arith.minimumf %25, %30 : vector<3x128xf32>
    %33 = arith.minimumf %31, %32 : vector<3x128xf32>
    %34 = arith.maximumf %17, %20 : vector<3x128xf32>
    %35 = arith.maximumf %25, %30 : vector<3x128xf32>
    %36 = arith.maximumf %34, %35 : vector<3x128xf32>
    %cst_19 = arith.constant 0.000000e+00 : f32
    %37 = vector.broadcast %cst_19 : f32 to vector<3x128xf32>
    %38 = arith.cmpf ogt, %33, %37 : vector<3x128xf32>
    %39 = vector.broadcast %2 : vector<1x128xf32> to vector<3x128xf32>
    %40 = arith.cmpf oge, %36, %39 : vector<3x128xf32>
    %41 = vector.broadcast %3 : vector<1x128xf32> to vector<3x128xf32>
    %42 = arith.cmpf ole, %36, %41 : vector<3x128xf32>
    %43 = arith.andi %40, %42 : vector<3x128xi1>
    %cst_20 = arith.constant 0.000000e+00 : f32
    %44 = vector.broadcast %cst_20 : f32 to vector<3x1xf32>
    %45 = arith.cmpf ogt, %14, %44 : vector<3x1xf32>
    %46 = arith.mulf %10, %12 : vector<3x1xf32>
    %47 = arith.andi %38, %43 : vector<3x128xi1>
    %48 = vector.broadcast %45 : vector<3x1xi1> to vector<3x128xi1>
    %49 = arith.andi %47, %48 : vector<3x128xi1>
    %cst_21 = arith.constant 1.000000e+08 : f32
    %50 = vector.shape_cast %46 : vector<3x1xf32> to vector<3x1xf32>
    %51 = vector.broadcast %50 : vector<3x1xf32> to vector<3x128xf32>
    %52 = vector.broadcast %cst_21 : f32 to vector<3x128xf32>
    %53 = arith.select %49, %51, %52 : vector<3x128xi1>, vector<3x128xf32>
    %cst_22 = arith.constant dense<0x7F800000> : vector<128xf32>
    %54 = vector.multi_reduction <minimumf>, %53, %cst_22 [0] : vector<3x128xf32> to vector<128xf32>
    %55 = vector.shape_cast %54 : vector<128xf32> to vector<1x128xf32>
    %56 = tpu.iota {dimensions = array<i32: 0>} : vector<3x128xi32>
    %57 = vector.broadcast %55 : vector<1x128xf32> to vector<3x128xf32>
    %58 = arith.cmpf oeq, %53, %57 : vector<3x128xf32>
    %c3_i32 = arith.constant 3 : i32
    %59 = vector.broadcast %c3_i32 : i32 to vector<3x128xi32>
    %60 = arith.select %58, %56, %59 : vector<3x128xi1>, vector<3x128xi32>
    %cst_23 = arith.constant dense<2147483647> : vector<128xi32>
    %61 = vector.multi_reduction <minsi>, %60, %cst_23 [0] : vector<3x128xi32> to vector<128xi32>
    %62 = vector.shape_cast %61 : vector<128xi32> to vector<1x128xi32>
    %63 = vector.broadcast %62 : vector<1x128xi32> to vector<3x128xi32>
    %64 = arith.cmpi eq, %56, %63 : vector<3x128xi32>
    %65 = arith.extui %64 : vector<3x128xi1> to vector<3x128xi32>
    %66 = arith.sitofp %65 : vector<3x128xi32> to vector<3x128xf32>
    %67 = vector.shape_cast %14 : vector<3x1xf32> to vector<3x1xf32>
    %68 = vector.broadcast %67 : vector<3x1xf32> to vector<3x128xf32>
    %69 = arith.mulf %68, %66 : vector<3x128xf32>
    %cst_24 = arith.constant dense<0.000000e+00> : vector<128xf32>
    %70 = vector.multi_reduction <add>, %69, %cst_24 [0] : vector<3x128xf32> to vector<128xf32>
    %71 = vector.shape_cast %70 : vector<128xf32> to vector<1x128xf32>
    %cst_25 = arith.constant 1.000000e+08 : f32
    %72 = vector.broadcast %cst_25 : f32 to vector<1x128xf32>
    %73 = arith.cmpf oeq, %55, %72 : vector<1x128xf32>
    %cst_26 = arith.constant 0.000000e+00 : f32
    %74 = vector.broadcast %cst_26 : f32 to vector<1x128xf32>
    %75 = arith.select %73, %74, %71 : vector<1x128xi1>, vector<1x128xf32>
    %cst_27 = arith.constant -1.000000e+00 : f32
    %76 = vector.broadcast %cst_27 : f32 to vector<1x128xf32>
    %77 = arith.select %4, %76, %75 : vector<1x128xi1>, vector<1x128xf32>
    %78 = tpu.iota {dimensions = array<i32: 0>} : vector<8x128xi32>
    %c0_i32 = arith.constant 0 : i32
    %79 = vector.broadcast %c0_i32 : i32 to vector<8x128xi32>
    %80 = arith.cmpi eq, %78, %79 : vector<8x128xi32>
    %81 = arith.mulf %17, %66 : vector<3x128xf32>
    %cst_28 = arith.constant dense<0.000000e+00> : vector<128xf32>
    %82 = vector.multi_reduction <add>, %81, %cst_28 [0] : vector<3x128xf32> to vector<128xf32>
    %83 = vector.shape_cast %82 : vector<128xf32> to vector<1x128xf32>
    %cst_29 = arith.constant 0.000000e+00 : f32
    %84 = vector.shape_cast %83 : vector<1x128xf32> to vector<1x128xf32>
    %85 = vector.broadcast %84 : vector<1x128xf32> to vector<8x128xf32>
    %86 = vector.broadcast %cst_29 : f32 to vector<8x128xf32>
    %87 = arith.select %80, %85, %86 : vector<8x128xi1>, vector<8x128xf32>
    %c1_i32 = arith.constant 1 : i32
    %88 = vector.broadcast %c1_i32 : i32 to vector<8x128xi32>
    %89 = arith.cmpi eq, %78, %88 : vector<8x128xi32>
    %90 = arith.mulf %20, %66 : vector<3x128xf32>
    %cst_30 = arith.constant dense<0.000000e+00> : vector<128xf32>
    %91 = vector.multi_reduction <add>, %90, %cst_30 [0] : vector<3x128xf32> to vector<128xf32>
    %92 = vector.shape_cast %91 : vector<128xf32> to vector<1x128xf32>
    %cst_31 = arith.constant 0.000000e+00 : f32
    %93 = vector.shape_cast %92 : vector<1x128xf32> to vector<1x128xf32>
    %94 = vector.broadcast %93 : vector<1x128xf32> to vector<8x128xf32>
    %95 = vector.broadcast %cst_31 : f32 to vector<8x128xf32>
    %96 = arith.select %89, %94, %95 : vector<8x128xi1>, vector<8x128xf32>
    %97 = arith.addf %87, %96 : vector<8x128xf32>
    %c2_i32 = arith.constant 2 : i32
    %98 = vector.broadcast %c2_i32 : i32 to vector<8x128xi32>
    %99 = arith.cmpi eq, %78, %98 : vector<8x128xi32>
    %100 = arith.mulf %25, %66 : vector<3x128xf32>
    %cst_32 = arith.constant dense<0.000000e+00> : vector<128xf32>
    %101 = vector.multi_reduction <add>, %100, %cst_32 [0] : vector<3x128xf32> to vector<128xf32>
    %102 = vector.shape_cast %101 : vector<128xf32> to vector<1x128xf32>
    %cst_33 = arith.constant 0.000000e+00 : f32
    %103 = vector.shape_cast %102 : vector<1x128xf32> to vector<1x128xf32>
    %104 = vector.broadcast %103 : vector<1x128xf32> to vector<8x128xf32>
    %105 = vector.broadcast %cst_33 : f32 to vector<8x128xf32>
    %106 = arith.select %99, %104, %105 : vector<8x128xi1>, vector<8x128xf32>
    %107 = arith.addf %97, %106 : vector<8x128xf32>
    %c3_i32_34 = arith.constant 3 : i32
    %108 = vector.broadcast %c3_i32_34 : i32 to vector<8x128xi32>
    %109 = arith.cmpi eq, %78, %108 : vector<8x128xi32>
    %110 = arith.mulf %30, %66 : vector<3x128xf32>
    %cst_35 = arith.constant dense<0.000000e+00> : vector<128xf32>
    %111 = vector.multi_reduction <add>, %110, %cst_35 [0] : vector<3x128xf32> to vector<128xf32>
    %112 = vector.shape_cast %111 : vector<128xf32> to vector<1x128xf32>
    %cst_36 = arith.constant 0.000000e+00 : f32
    %113 = vector.shape_cast %112 : vector<1x128xf32> to vector<1x128xf32>
    %114 = vector.broadcast %113 : vector<1x128xf32> to vector<8x128xf32>
    %115 = vector.broadcast %cst_36 : f32 to vector<8x128xf32>
    %116 = arith.select %109, %114, %115 : vector<8x128xi1>, vector<8x128xf32>
    %117 = arith.addf %107, %116 : vector<8x128xf32>
    %c4_i32 = arith.constant 4 : i32
    %118 = vector.broadcast %c4_i32 : i32 to vector<8x128xi32>
    %119 = arith.cmpi eq, %78, %118 : vector<8x128xi32>
    %cst_37 = arith.constant 0.000000e+00 : f32
    %120 = vector.shape_cast %77 : vector<1x128xf32> to vector<1x128xf32>
    %121 = vector.broadcast %120 : vector<1x128xf32> to vector<8x128xf32>
    %122 = vector.broadcast %cst_37 : f32 to vector<8x128xf32>
    %123 = arith.select %119, %121, %122 : vector<8x128xi1>, vector<8x128xf32>
    %124 = arith.addf %117, %123 : vector<8x128xf32>
    %c0_38 = arith.constant 0 : index
    %c0_39 = arith.constant 0 : index
    %c0_40 = arith.constant 0 : index
    %125 = vector.load %arg5[%c0_38, %c0_39, %c0_40] : memref<1x8x128xf32, #tpu.memory_space<vmem>>, vector<1x8x128xf32>
    %126 = vector.shape_cast %125 : vector<1x8x128xf32> to vector<8x128xf32>
    %127 = vector.shape_cast %124 : vector<8x128xf32> to vector<1x8x128xf32>
    tpu.vector_store %arg5[%c0_38, %c0_39, %c0_40], %127 {strides = array<i32>} : memref<1x8x128xf32, #tpu.memory_space<vmem>>, vector<1x8x128xf32>,
    return
  }
  func.func @transform_0(%arg0: i32, %arg1: i32) -> (i32, i32) {
    %c0_i32 = arith.constant 0 : i32
    %c0_i32_0 = arith.constant 0 : i32
    return %c0_i32, %arg1 : i32, i32
  }
  func.func @transform_1(%arg0: i32, %arg1: i32) -> (i32, i32) {
    %c0_i32 = arith.constant 0 : i32
    %c0_i32_0 = arith.constant 0 : i32
    return %c0_i32, %arg1 : i32, i32
  }
  func.func @transform_2(%arg0: i32, %arg1: i32) -> (i32, i32, i32) {
    %c0_i32 = arith.constant 0 : i32
    %c0_i32_0 = arith.constant 0 : i32
    %c0_i32_1 = arith.constant 0 : i32
    return %arg0, %c0_i32, %c0_i32_0 : i32, i32, i32
  }
  func.func @transform_3(%arg0: i32, %arg1: i32) -> (i32, i32, i32) {
    %c0_i32 = arith.constant 0 : i32
    %c0_i32_0 = arith.constant 0 : i32
    return %arg0, %c0_i32, %arg1 : i32, i32, i32
  }
}

</mosaic_0001>

<llo_original>
// kernel: tpu_custom_call.1
$region0: #{tpu_custom_call.1}
  #allocation0 [shape = 'u32[]', space=smem, size = 0x4, offset = 0x4, fixed_abs, tag = 'smem constant byte address 0x4 - core index']
  #allocation1 [shape = 'u32[72,128]{1,0:T(1,128)}', space=vmem, size = 0x9000, scoped, tag = 'internal scratch']
  %s0 = inlined_call_operand.vmem [shape: f32[2,384], index: 0, kind: input, shape index: {}]
  %s1 = inlined_call_operand.vmem [shape: f32[2,384], index: 1, kind: input, shape index: {}]
  %s2 = inlined_call_operand.vmem [shape: f32[2,3,5], index: 2, kind: input, shape index: {}]
  %s3 = inlined_call_operand.hbm [shape: f32[2,8,384], index: 3, kind: output, shape index: {}]
  %s4 = sld [smem:[#allocation0]]
  $region45: #{tpu_custom_call.1} parent=0
    _
  %s6 = ssub.s32 1, %s4
  %s7 = scalar_select 0, %s6, %s4
  $region1: #{tpu_custom_call.1} parent=0
    #allocation2 [shape = 'u8[8192]{0}', space=vmem, size = 0x2000, scoped, tag = 'output window, operand 0']
    #allocation3 [shape = 's32[2]{0}', space=sflag, size = 0x8, scoped, tag = 'scoped memory for tpu_custom_call.1']
    %8 = vsyncpa [#allocation3], 0
    %s9 = scalar_lea.sflag [#allocation3], 1
    %10 = vsyncpa %s9, 0
    loop: start=0, step=1, limit=8
    $region2: #{tpu_custom_call.1} parent=1 // loop_pre_header
      _
    $region3: #{tpu_custom_call.1} parent=1 // loop_header
      %s12 = sphi 0, %s16
      %p13 = scmp.ge.s32.totalorder %s12, 8
      %s19 = sphi 0, %s31
      %s20 = sphi 0, %s27
      %s21 = sphi 0, %s19
      %s22 = sphi 0, %s20
      %s23 = sphi 0, %s21
      %s24 = sphi 0, %s22
      %s34 = sphi 0, %s36
      %s37 = sphi 0, %s34
      %s38 = sphi 0, %s37
      %s54 = sphi 0, %s38
      %s60 = sphi 0, %s62
      %s63 = sphi 0, %s60
      %s64 = sphi 0, %s63
      %s80 = sphi 0, %s64
      %s86 = sphi 0, %s88
      %s89 = sphi 0, %s86
      %s90 = sphi 0, %s89
      %s106 = sphi 0, %s90
      %s114 = sphi 0, %s116
      %s117 = sphi 0, %s114
      %s118 = sphi 0, %s117
      %s134 = sphi 0, %s118
    $region4: #{tpu_custom_call.1} parent=1 // loop_header_branch
      %15 = sbr.rel (%p13) target = $region8
    $region5: #{tpu_custom_call.1} parent=1 // loop_body
      %s17 = ssub.s32 %s12, 1
      %s18 = ssub.s32 %s12, 2
      %s25 = sadd.s32 1, %s20
      %p26 = scmp.ge.s32.totalorder %s25, 3
      %s27 = scalar_select %p26, 0, %s25
      %s28 = sadd.s32 1, %s19
      %s29 = scalar_select %p26, %s28, %s19
      %p30 = scmp.ge.s32.totalorder %s29, 2
      %s31 = scalar_select %p30, 0, %s29
      %s32 = ssub.s32 %s20, %s27
      %p33 = scmp.eq.s32.totalorder %s32, 0
      %s35 = sadd.s32 %s34, 1
      %s36 = scalar_select %p33, %s34, %s35
      %p39 = pneg %p33
      %p40 = scmp.eq.s32.totalorder %s12, 5
      %p41 = por %p39, %p40
      %p42 = scmp.ne.s32.totalorder %s34, %s37
      %p43 = scmp.eq.s32.totalorder %s12, 0
      %p44 = por %p42, %p43
      %p45 = scmp.ne.s32.totalorder %s34, %s37
      %p46 = scmp.eq.s32.totalorder %s17, 5
      %p47 = por %p45, %p46
      %p48 = scmp.ne.s32.totalorder %s37, %s38
      %p49 = scmp.eq.s32.totalorder %s17, 0
      %p50 = por %p48, %p49
      %p51 = scmp.ne.s32.totalorder %s37, %s38
      %p52 = scmp.eq.s32.totalorder %s18, 5
      %p53 = por %p51, %p52
      %p55 = scmp.ne.s32.totalorder %s38, %s54
      %p56 = scmp.eq.s32.totalorder %s18, 0
      %p57 = por %p55, %p56
      %s58 = ssub.s32 %s20, %s27
      %p59 = scmp.eq.s32.totalorder %s58, 0
      %s61 = sadd.s32 %s60, 1
      %s62 = scalar_select %p59, %s60, %s61
      %p65 = pneg %p59
      %p66 = scmp.eq.s32.totalorder %s12, 5
      %p67 = por %p65, %p66
      %p68 = scmp.ne.s32.totalorder %s60, %s63
      %p69 = scmp.eq.s32.totalorder %s12, 0
      %p70 = por %p68, %p69
      %p71 = scmp.ne.s32.totalorder %s60, %s63
      %p72 = scmp.eq.s32.totalorder %s17, 5
      %p73 = por %p71, %p72
      %p74 = scmp.ne.s32.totalorder %s63, %s64
      %p75 = scmp.eq.s32.totalorder %s17, 0
      %p76 = por %p74, %p75
      %p77 = scmp.ne.s32.totalorder %s63, %s64
      %p78 = scmp.eq.s32.totalorder %s18, 5
      %p79 = por %p77, %p78
      %p81 = scmp.ne.s32.totalorder %s64, %s80
      %p82 = scmp.eq.s32.totalorder %s18, 0
      %p83 = por %p81, %p82
      %s84 = ssub.s32 %s19, %s31
      %p85 = scmp.eq.s32.totalorder %s84, 0
      %s87 = sadd.s32 %s86, 1
      %s88 = scalar_select %p85, %s86, %s87
      %p91 = pneg %p85
      %p92 = scmp.eq.s32.totalorder %s12, 5
      %p93 = por %p91, %p92
      %p94 = scmp.ne.s32.totalorder %s86, %s89
      %p95 = scmp.eq.s32.totalorder %s12, 0
      %p96 = por %p94, %p95
      %p97 = scmp.ne.s32.totalorder %s86, %s89
      %p98 = scmp.eq.s32.totalorder %s17, 5
      %p99 = por %p97, %p98
      %p100 = scmp.ne.s32.totalorder %s89, %s90
      %p101 = scmp.eq.s32.totalorder %s17, 0
      %p102 = por %p100, %p101
      %p103 = scmp.ne.s32.totalorder %s89, %s90
      %p104 = scmp.eq.s32.totalorder %s18, 5
      %p105 = por %p103, %p104
      %p107 = scmp.ne.s32.totalorder %s90, %s106
      %p108 = scmp.eq.s32.totalorder %s18, 0
      %p109 = por %p107, %p108
      %s110 = ssub.s32 %s19, %s31
      %s111 = ssub.s32 %s20, %s27
      %s112 = sor.u32 %s110, %s111
      %p113 = scmp.eq.s32.totalorder %s112, 0
      %s115 = sadd.s32 %s114, 1
      %s116 = scalar_select %p113, %s114, %s115
      %p119 = pneg %p113
      %p120 = scmp.eq.s32.totalorder %s12, 5
      %p121 = por %p119, %p120
      %p122 = scmp.ne.s32.totalorder %s114, %s117
      %p123 = scmp.eq.s32.totalorder %s12, 0
      %p124 = por %p122, %p123
      %p125 = scmp.ne.s32.totalorder %s114, %s117
      %p126 = scmp.eq.s32.totalorder %s17, 5
      %p127 = por %p125, %p126
      %p128 = scmp.ne.s32.totalorder %s117, %s118
      %p129 = scmp.eq.s32.totalorder %s17, 0
      %p130 = por %p128, %p129
      %p131 = scmp.ne.s32.totalorder %s117, %s118
      %p132 = scmp.eq.s32.totalorder %s18, 5
      %p133 = por %p131, %p132
      %p135 = scmp.ne.s32.totalorder %s118, %s134
      %p136 = scmp.eq.s32.totalorder %s18, 0
      %p137 = por %p135, %p136
      %p138 = scmp.le.s32.totalorder 1, %s12
      %p139 = scmp.lt.s32.totalorder %s12, 7
      %p140 = pnand %p138, %p139
      %p141 = pneg %p140
      // Predicated region
      $region9: #{tpu_custom_call.1} parent=5 // pred_check
        _
      $region10: #{tpu_custom_call.1} parent=5 // pred_check_branch
        %143 = sbr.rel (%p140) target = $region12
      $region11: #{tpu_custom_call.1} parent=5 // pred_region
        %s144 = ssub.s32 %s12, 1
      $region12: #{tpu_custom_call.1} parent=5 // pred_fallthru
        _
      %p145 = scmp.lt.s32.totalorder %s12, 6
      // Predicated region
      $region13: #{tpu_custom_call.1} parent=5 // pred_check
        %p146 = pneg %p145
      $region14: #{tpu_custom_call.1} parent=5 // pred_check_branch
        %148 = sbr.rel (%p146) target = $region16
      $region15: #{tpu_custom_call.1} parent=5 // pred_region
        // Predicated region
        $region17: #{tpu_custom_call.1} parent=15 // pred_check
          %p149 = pneg %p44
        $region18: #{tpu_custom_call.1} parent=15 // pred_check_branch
          %151 = sbr.rel (%p149) target = $region20
        $region19: #{tpu_custom_call.1} parent=15 // pred_region
          %p152 = scmp.lt.s32.totalorder %s20, 2
          %s153 = scalar_select %p152, %s20, 2
          %s154 = smul.addr %s153, 2
          %s155 = scalar_lea.vmem %s0, %s154
        $region20: #{tpu_custom_call.1} parent=15 // pred_fallthru
          _
        // Predicated region
        $region21: #{tpu_custom_call.1} parent=15 // pred_check
          %p156 = pneg %p70
        $region22: #{tpu_custom_call.1} parent=15 // pred_check_branch
          %158 = sbr.rel (%p156) target = $region24
        $region23: #{tpu_custom_call.1} parent=15 // pred_region
          %p159 = scmp.lt.s32.totalorder %s20, 2
          %s160 = scalar_select %p159, %s20, 2
          %s161 = smul.addr %s160, 2
          %s162 = scalar_lea.vmem %s1, %s161
        $region24: #{tpu_custom_call.1} parent=15 // pred_fallthru
          _
        // Predicated region
        $region25: #{tpu_custom_call.1} parent=15 // pred_check
          %p163 = pneg %p96
        $region26: #{tpu_custom_call.1} parent=15 // pred_check_branch
          %165 = sbr.rel (%p163) target = $region28
        $region27: #{tpu_custom_call.1} parent=15 // pred_region
          %p166 = scmp.lt.s32.totalorder %s19, 1
          %s167 = scalar_select %p166, %s19, 1
          %s168 = smul.addr %s167, 4
          %s169 = scalar_lea.vmem %s2, %s168
        $region28: #{tpu_custom_call.1} parent=15 // pred_fallthru
          _
      $region16: #{tpu_custom_call.1} parent=5 // pred_fallthru
        _
      %p170 = scmp.le.s32.totalorder 1, %s12
      %p171 = scmp.lt.s32.totalorder %s12, 7
      %p172 = pnand %p170, %p171
      %p173 = pneg %p172
      // Predicated region
      $region29: #{tpu_custom_call.1} parent=5 // pred_check
        _
      $region30: #{tpu_custom_call.1} parent=5 // pred_check_branch
        %175 = sbr.rel (%p172) target = $region32
      $region31: #{tpu_custom_call.1} parent=5 // pred_region
        %s176 = ssub.s32 %s12, 1
        %p177 = scmp.lt.s32.totalorder %s22, 2
        %s178 = scalar_select %p177, %s22, 2
        %s179 = smul.addr %s178, 2
        %s180 = scalar_lea.vmem %s0, %s179
        %p181 = pneg %p50
        %p182 = pneg %p47
        %p183 = scmp.lt.s32.totalorder %s22, 2
        %s184 = scalar_select %p183, %s22, 2
        %s185 = smul.addr %s184, 2
        %s186 = scalar_lea.vmem %s1, %s185
        %p187 = pneg %p76
        %p188 = pneg %p73
        %p189 = scmp.lt.s32.totalorder %s21, 1
        %s190 = scalar_select %p189, %s21, 1
        %s191 = smul.addr %s190, 4
        %s192 = scalar_lea.vmem %s2, %s191
        %p193 = pneg %p102
        %p194 = pneg %p99
        %p195 = pneg %p130
        %p196 = pneg %p127
        %s197 = sand.u32 %s117, 1
        %s198 = scalar_lea.sflag [#allocation3], %s197
        %s199 = sand.u32 %s117, 1
        %s200 = smul.addr %s199, 8
        %s201 = scalar_lea.vmem [#allocation2], %s200
        %p202 = scmp.lt.s32.totalorder %s22, 2
        %s203 = scalar_select %p202, %s22, 2
        %s204 = smul.addr %s203, 2
        %s205 = scalar_lea.vmem %s0, %s204
        %p206 = scmp.lt.s32.totalorder %s22, 2
        %s207 = scalar_select %p206, %s22, 2
        %s208 = smul.addr %s207, 2
        %s209 = scalar_lea.vmem %s1, %s208
        %p210 = scmp.lt.s32.totalorder %s21, 1
        %s211 = scalar_select %p210, %s21, 1
        %s212 = smul.addr %s211, 4
        %s213 = scalar_lea.vmem %s2, %s212
        %v214 = vld [vmem:[%s205] sm:$0x1]
        %v215 = vld [vmem:[%s205 + $0x1] sm:$0x1]
        %v216 = vld [vmem:[%s209] sm:$0x1]
        %v217 = vld [vmem:[%s209 + $0x1] sm:$0x1]
        %vm218 = vcmp.gt.f32.partialorder %v216, %v217
        %v219 = vld [vmem:[%s213] sm:$0x7]
        %v220 = vperm.slane %v214, 0
        %222 = vset.pattern.permute.xlu0 0
        %223 = vperm.xlu0 %222, %v219
        %v224 = vpop.permute.xlu0 %223
        %v226 = vsub.f32 %v220, %v224
        %v227 = vperm.slane %v215, 0
        %228 = vset.pattern.permute.xlu0 1
        %229 = vperm.xlu0 %228, %v219
        %v230 = vpop.permute.xlu0 %229
        %v232 = vsub.f32 %v227, %v230
        %v233 = vmul.f32 %v219, 0.5
        %235 = vset.pattern.permute.xlu0 2
        %236 = vperm.xlu0 %235, %v233
        %v237 = vpop.permute.xlu0 %236
        %v239 = vadd.f32 %v220, %v237
        %240 = vset.pattern.permute.xlu0 3
        %241 = vperm.xlu0 %240, %v233
        %v242 = vpop.permute.xlu0 %241
        %v244 = vadd.f32 %v227, %v242
        %v245 = vmin.f32 %v226, %v232
        %v246 = vmin.f32 %v239, %v244
        %v247 = vmin.f32 %v245, %v246
        %v248 = vmax.f32 %v226, %v232
        %v249 = vmax.f32 %v239, %v244
        %v250 = vmax.f32 %v248, %v249
        %vm251 = vcmp.gt.f32.partialorder %v247, 0.0
        %v252 = vperm.slane %v216, 0
        %vm253 = vcmp.ge.f32.partialorder %v250, %v252
        %v254 = vperm.slane %v217, 0
        %vm255 = vcmp.le.f32.partialorder %v250, %v254
        %vm256 = vmand %vm253, %vm255
        %vm257 = vcmp.gt.f32.partialorder %v219, 0.0
        %258 = vrot.lane.b32.xlu0 %v219, 127
        %v259 = vpop.permute.xlu0 %258
        %v261 = vmul.f32 %v219, %v259
        %vm262 = vmand %vm251, %vm256
        %v263 = vsel %vm257, 1, 0
        %264 = vset.pattern.permute.xlu0 4
        %265 = vperm.xlu0 %264, %v263
        %v266 = vpop.permute.xlu0 %265
        %vm267 = vcmp.eq.s32.totalorder %v266, 1
        %vm268 = vmand %vm262, %vm267
        %270 = vset.pattern.permute.xlu0 2
        %271 = vperm.xlu0 %270, %v261
        %v272 = vpop.permute.xlu0 %271
        %v274 = vsel %vm268, %v272, 1e+08
        %vm275 = vcmask 1042432
        %v276 = vsel %vm275, %v274, inf
        %v277 = vrot.slane %v276, 4
        %v278 = vmin.f32 %v276, %v277
        %v279 = vrot.slane %v278, 2
        %v280 = vmin.f32 %v278, %v279
        %v281 = vrot.slane %v280, 1
        %v282 = vmin.f32 %v280, %v281
        %v283 = vlaneseq
        %v284 = vshrl.u32 %v283, 7
        %vm285 = vcmp.eq.f32.partialorder %v274, %v282
        %v286 = vsel %vm285, %v284, 3
        %v287 = vsel %vm275, %v286, 2147483647
        %v288 = vrot.slane %v287, 4
        %vm289 = vcmp.lt.s32.totalorder %v287, %v288
        %v290 = vsel %vm289, %v287, %v288
        %v291 = vrot.slane %v290, 2
        %vm292 = vcmp.lt.s32.totalorder %v290, %v291
        %v293 = vsel %vm292, %v290, %v291
        %v294 = vrot.slane %v293, 1
        %vm295 = vcmp.lt.s32.totalorder %v293, %v294
        %v296 = vsel %vm295, %v293, %v294
        %vm297 = vcmp.eq.s32.totalorder %v284, %v296
        %v298 = vsel %vm297, 1, 0
        %v299 = vcvt.s32.f32 %v298
        %300 = vset.pattern.permute.xlu0 4
        %301 = vperm.xlu0 %300, %v219
        %v302 = vpop.permute.xlu0 %301
        %v304 = vmul.f32 %v302, %v299
        %v305 = vsel %vm275, %v304, 0.0
        %v306 = vrot.slane %v305, 4
        %v307 = vadd.f32 %v305, %v306
        %v308 = vrot.slane %v307, 2
        %v309 = vadd.f32 %v307, %v308
        %v310 = vrot.slane %v309, 1
        %v311 = vadd.f32 %v309, %v310
        %vm312 = vcmp.eq.f32.partialorder %v282, 1e+08
        %v313 = vsel %vm312, 0.0, %v311
        %v314 = vsel %vm218, -1.0, %v313
        %vm315 = vcmp.eq.s32.totalorder %v284, 0
        %v316 = vmul.f32 %v226, %v299
        %v317 = vsel %vm275, %v316, 0.0
        %v318 = vrot.slane %v317, 4
        %v319 = vadd.f32 %v317, %v318
        %v320 = vrot.slane %v319, 2
        %v321 = vadd.f32 %v319, %v320
        %v322 = vrot.slane %v321, 1
        %v323 = vadd.f32 %v321, %v322
        %v324 = vsel %vm315, %v323, 0.0
        %vm325 = vcmp.eq.s32.totalorder %v284, 1
        %v326 = vmul.f32 %v232, %v299
        %v327 = vsel %vm275, %v326, 0.0
        %v328 = vrot.slane %v327, 4
        %v329 = vadd.f32 %v327, %v328
        %v330 = vrot.slane %v329, 2
        %v331 = vadd.f32 %v329, %v330
        %v332 = vrot.slane %v331, 1
        %v333 = vadd.f32 %v331, %v332
        %v334 = vsel %vm325, %v333, 0.0
        %v335 = vadd.f32 %v324, %v334
        %vm336 = vcmp.eq.s32.totalorder %v284, 2
        %v337 = vmul.f32 %v239, %v299
        %v338 = vsel %vm275, %v337, 0.0
        %v339 = vrot.slane %v338, 4
        %v340 = vadd.f32 %v338, %v339
        %v341 = vrot.slane %v340, 2
        %v342 = vadd.f32 %v340, %v341
        %v343 = vrot.slane %v342, 1
        %v344 = vadd.f32 %v342, %v343
        %v345 = vsel %vm336, %v344, 0.0
        %v346 = vadd.f32 %v335, %v345
        %vm347 = vcmp.eq.s32.totalorder %v284, 3
        %v348 = vmul.f32 %v244, %v299
        %v349 = vsel %vm275, %v348, 0.0
        %v350 = vrot.slane %v349, 4
        %v351 = vadd.f32 %v349, %v350
        %v352 = vrot.slane %v351, 2
        %v353 = vadd.f32 %v351, %v352
        %v354 = vrot.slane %v353, 1
        %v355 = vadd.f32 %v353, %v354
        %v356 = vsel %vm347, %v355, 0.0
        %v357 = vadd.f32 %v346, %v356
        %vm358 = vcmp.eq.s32.totalorder %v284, 4
        %v359 = vperm.slane %v314, 0
        %v360 = vsel %vm358, %v359, 0.0
        %v361 = vadd.f32 %v357, %v360
        %362 = vst [vmem:[%s201] sm:$0xff] %v361
        %s363 = sand.u32 %s117, 1
        %s364 = scalar_lea.sflag [#allocation3], %s363
        %s365 = sand.u32 %s117, 1
        %s366 = smul.addr %s365, 8
        %s367 = scalar_lea.vmem [#allocation2], %s366
        // Predicated region
        $region33: #{tpu_custom_call.1} parent=31 // pred_check
          %p368 = pneg %p127
        $region34: #{tpu_custom_call.1} parent=31 // pred_check_branch
          %370 = sbr.rel (%p368) target = $region36
        $region35: #{tpu_custom_call.1} parent=31 // pred_region
          %372 = vsyncadd %s364, 0
          %s373 = smul.addr %s21, 3
          %s374 = sadd.s32 %s22, %s373
          %s375 = smul.addr %s374, 8
          %s376 = scalar_lea.hbm %s3, %s375
          %s378 = sshll.u32 %s367, 4
          %s379 = int_to_ptr.vmem [resolvable:$true] %s378
          %s380 = sshll.u32 %s376, 4
          %s381 = int_to_ptr.hbm [resolvable:$true] %s380
          %383 = dma.vmem_to_hbm [thread:$0]  %s379, 128, %s381, %s364
        $region36: #{tpu_custom_call.1} parent=31 // pred_fallthru
          _
      $region32: #{tpu_custom_call.1} parent=5 // pred_fallthru
        _
      %p384 = scmp.le.s32.totalorder 2, %s12
      // Predicated region
      $region37: #{tpu_custom_call.1} parent=5 // pred_check
        %p385 = pneg %p384
      $region38: #{tpu_custom_call.1} parent=5 // pred_check_branch
        %387 = sbr.rel (%p385) target = $region40
      $region39: #{tpu_custom_call.1} parent=5 // pred_region
        %s388 = ssub.s32 %s12, 2
        // Predicated region
        $region41: #{tpu_custom_call.1} parent=39 // pred_check
          %p389 = pneg %p133
        $region42: #{tpu_custom_call.1} parent=39 // pred_check_branch
          %391 = sbr.rel (%p389) target = $region44
        $region43: #{tpu_custom_call.1} parent=39 // pred_region
          %s392 = sand.u32 %s118, 1
          %s393 = scalar_lea.sflag [#allocation3], %s392
          %s394 = sand.u32 %s118, 1
          %s395 = smul.addr %s394, 8
          %s396 = scalar_lea.vmem [#allocation2], %s395
          %398 = dma.done %s393, 128
        $region44: #{tpu_custom_call.1} parent=39 // pred_fallthru
          _
      $region40: #{tpu_custom_call.1} parent=5 // pred_fallthru
        _
    $region6: #{tpu_custom_call.1} parent=1 // loop_footer
      %s16 = sadd.s32 1, %s12
    $region7: #{tpu_custom_call.1} parent=1 // loop_footer_branch
      %11 = sbr.rel target = $region3
    $region8: #{tpu_custom_call.1} parent=1 // loop_exit
      _
    %399 = vsyncpa [#allocation3], 1
    %s400 = scalar_lea.sflag [#allocation3], 1
    %401 = vsyncpa %s400, 1

</llo_original>
